<compile_context>
chip_gen: v7x
topology: tpu7x:2x2x1
jax: 0.10.0
libtpu: 0.0.40
codegen_flags: <defaults>
</compile_context>

<pallas_src>
import functools

import jax
import jax.numpy as jnp
import numpy as np
from jax.experimental import pallas as pl
from jax.experimental.pallas import tpu as pltpu

LANE = 128          # vreg lane width (fast axis)
SUBLANE_F32 = 8     # f32 sublane count
SUBLANE_BF16 = 16   # bf16 packs 2 rows per sublane
MAX_BLOCK_M = 256   # vreg-budget cap on the batch tile (review item 3)


def _round_up(n, m):
    return ((n + m - 1) // m) * m


# ----------------------------- Pallas kernel --------------------------------
def _fused_mlp_kernel(x_ref, w_ref, b_ref, o_ref, *, n_layers):
    # x_ref: (TM, Fin_pad) f32 activations (unpadded feature width, sublane-rounded)
    # w_ref: (L, P, P)     bf16 stacked weights, stored (in, out), zero-padded
    # b_ref: (L, P)        f32 stacked biases, zero-padded
    # o_ref: (TM, P)       f32 lane-dense output
    h = x_ref[...]                                   # f32
    full_k = w_ref.shape[1]
    for l in range(n_layers):                        # static unrolled layer loop
        k = h.shape[1]                               # static per layer
        w_l = w_ref[l] if k == full_k else w_ref[l, :k, :]
        y = jnp.dot(h.astype(jnp.bfloat16), w_l,
                    preferred_element_type=jnp.float32)   # MXU, f32 accumulate
        y = y + b_ref[l:l + 1, :]                    # (1, P) row broadcast, f32
        if l < n_layers - 1:                         # no activation after last layer
            y = jnp.maximum(y, 0.0)
        h = y                                        # stays in vregs
    o_ref[...] = h.astype(o_ref.dtype)


def fused_mlp_pallas(x, w_stack, b_stack, n_layers, block_m):
    """Entire MLP in one pallas_call with a batch grid; weights stay resident."""
    Bp, fin = x.shape
    L, _, P = w_stack.shape
    grid = (Bp // block_m,)

    # Resident VMEM footprint (weights/biases once + double-buffered act tiles).
    weight_bytes = L * P * P * 2 + L * P * 4
    act_bytes = 2 * 2 * (block_m * fin * 4 + block_m * P * 4)
    footprint = weight_bytes + act_bytes
    vmem_limit = None
    if footprint > 8 * 1024 * 1024:   # v5e scoped default is 16 MiB; leave headroom
        vmem_limit = min(int(footprint * 2), 100 * 1024 * 1024)

    cost = pl.CostEstimate(
        flops=2 * Bp * P * P * n_layers,
        transcendentals=0,
        bytes_accessed=(x.size * 4 + w_stack.size * 2 + b_stack.size * 4
                        + Bp * P * 4),
    )

    kernel = functools.partial(_fused_mlp_kernel, n_layers=n_layers)
    return pl.pallas_call(
        kernel,
        out_shape=jax.ShapeDtypeStruct((Bp, P), jnp.float32),
        grid_spec=pltpu.PrefetchScalarGridSpec(
            num_scalar_prefetch=0,
            grid=grid,
            in_specs=[
                pl.BlockSpec((block_m, fin), lambda i: (i, 0)),   # batch-tiled x
                pl.BlockSpec((L, P, P), lambda i: (0, 0, 0)),     # resident weights
                pl.BlockSpec((L, P), lambda i: (0, 0)),           # resident biases
            ],
            out_specs=pl.BlockSpec((block_m, P), lambda i: (i, 0)),
        ),
        compiler_params=pltpu.CompilerParams(
            dimension_semantics=("parallel",),
            vmem_limit_bytes=vmem_limit,
        ),
        cost_estimate=cost,
    )(x, w_stack, b_stack)


# --------------------------- Module in JAX -----------------------------------
def build_neuron_sizes(input_size, output_size, nb_layers=0,
                       nb_neurons_layer=0, layers_and_neurons=()):
    """Reproduce the neuron-count logic of neural_network_WPS.__init__."""
    nb_layers = int(nb_layers) if nb_layers != 0 else 10
    if nb_neurons_layer != 0:
        neurons = np.array(int(nb_neurons_layer) * np.ones(nb_layers + 1), dtype=int)
    elif layers_and_neurons:
        neurons = np.array([input_size, *layers_and_neurons, output_size], dtype=int)
    else:
        neurons = np.linspace(input_size, output_size, nb_layers + 1, dtype=int)
    neurons[0] = int(input_size)
    neurons[-1] = int(output_size)
    return neurons


def init_params(neurons, key):
    """PyTorch-Linear-style init: U(-1/sqrt(fan_in), 1/sqrt(fan_in)); W stored (out, in)."""
    params = []
    for i in range(len(neurons) - 1):
        fan_in, fan_out = int(neurons[i]), int(neurons[i + 1])
        key, kw, kb = jax.random.split(key, 3)
        bound = 1.0 / np.sqrt(fan_in)
        w = jax.random.uniform(kw, (fan_out, fan_in), jnp.float32, -bound, bound)
        b = jax.random.uniform(kb, (fan_out,), jnp.float32, -bound, bound)
        params.append((w, b))
    return params


def pack_params(params, pad_width):
    """One-time packing: transpose to (in,out), zero-pad to lane width, stack.

    Weights are stored bf16 (native MXU input dtype on all generations);
    biases stay f32 (elementwise add runs on the VPU in f32)."""
    n_layers = len(params)
    w_stack = np.zeros((n_layers, pad_width, pad_width), dtype=np.float32)
    b_stack = np.zeros((n_layers, pad_width), dtype=np.float32)
    for l, (w, b) in enumerate(params):
        fan_out, fan_in = w.shape                       # PyTorch layout (out, in)
        w_stack[l, :fan_in, :fan_out] = np.asarray(w).T
        b_stack[l, :fan_out] = np.asarray(b)
    return (jnp.asarray(w_stack).astype(jnp.bfloat16),
            jnp.asarray(b_stack))


@functools.partial(jax.jit,
                   static_argnames=("n_layers", "in_features", "out_features",
                                    "block_m"))
def neural_network_wps_forward(x, w_stack, b_stack, *,
                               n_layers, in_features, out_features,
                               block_m=MAX_BLOCK_M):
    """Fused Pallas forward. Norm layers are Identity (default norm_type='ReLU')."""
    B = x.shape[0]
    P = w_stack.shape[-1]

    # Feature dim: only pad if it isn't already a clean bf16-sublane multiple
    # (zero-pad is exact for x @ W + b with zero-padded W). No pad in the demo.
    fin_pad = _round_up(in_features, SUBLANE_BF16)
    if fin_pad != in_features:
        x = jnp.pad(x, ((0, 0), (0, fin_pad - in_features)))

    # Batch tile: cap at MAX_BLOCK_M rows; round batch up to a tile multiple.
    tm = min(block_m, _round_up(B, SUBLANE_F32))
    Bp = _round_up(B, tm)
    if Bp != B:
        x = jnp.pad(x, ((0, Bp - B), (0, 0)))

    y_pad = fused_mlp_pallas(x, w_stack, b_stack, n_layers, tm)
    return y_pad[:B, :out_features]


# --------------------------- References --------------------------------------
def reference_forward_f32(params, x):
    """Pure-JAX f32 reference matching the PyTorch semantics."""
    n_layers = len(params)
    for l1, (w, b) in enumerate(params):
        x = x @ w.T + b
        if l1 < n_layers - 1:
            x = jnp.maximum(x, 0.0)
    return x


def reference_forward_bf16(params, x):
    """Reference with the same bf16-input / f32-accumulate matmul as the kernel."""
    n_layers = len(params)
    h = x
    for l1, (w, b) in enumerate(params):
        y = jnp.dot(h.astype(jnp.bfloat16),
                    jnp.asarray(w).astype(jnp.bfloat16).T,
                    preferred_element_type=jnp.float32) + b
        if l1 < n_layers - 1:
            y = jnp.maximum(y, 0.0)
        h = y
    return h


# --------------------------------- main --------------------------------------
if __name__ == "__main__":
    key = jax.random.PRNGKey(0)

    # input_size=16, output_size=4, nb_layers=3 -> widths linspace = [16, 12, 8, 4]
    input_size, output_size, nb_layers = 16, 4, 3
    # >= 256-512 rows per call so the kernel isn't pure launch overhead
    # (review item 1); grid=(2,) with TM=256 exercises the batch grid / megacore.
    batch = 512

    neurons = build_neuron_sizes(input_size, output_size, nb_layers=nb_layers)
    key, pkey, xkey = jax.random.split(key, 3)
    params = init_params(neurons, pkey)
    x = jax.random.normal(xkey, (batch, input_size), jnp.float32)

    # One-time packing: lane-pad every layer width to 128 (max width here is 16).
    pad_width = _round_up(int(max(neurons)), LANE)
    w_stack, b_stack = pack_params(params, pad_width)

    out = neural_network_wps_forward(
        x, w_stack, b_stack,
        n_layers=len(params), in_features=input_size, out_features=output_size)
    out = jax.block_until_ready(out)

    assert out.shape == (batch, output_size), out.shape
    ref_bf16 = reference_forward_bf16(params, x)   # same matmul dtype path
    ref_f32 = reference_forward_f32(params, x)     # full-precision PyTorch semantics
    np.testing.assert_allclose(np.asarray(out), np.asarray(ref_bf16),
                               rtol=5e-3, atol=5e-3)
    np.testing.assert_allclose(np.asarray(out), np.asarray(ref_f32),
                               rtol=5e-2, atol=5e-2)

    print("KERNEL_OK")
</pallas_src>

<mosaic_0001>
module attributes {stable_mosaic.version = 11 : i64} {
  func.func @_fused_mlp_kernel(%arg0: i32, %arg1: memref<256x16xf32, #tpu.memory_space<vmem>>, %arg2: memref<3x128x128xbf16, #tpu.memory_space<vmem>>, %arg3: memref<3x128xf32, #tpu.memory_space<vmem>>, %arg4: memref<256x128xf32, #tpu.memory_space<vmem>>) attributes {dimension_semantics = [#tpu.dimension_semantics<parallel>], iteration_bounds = array<i64: 2>, scalar_prefetch = 0 : i64, scratch_operands = 0 : i64, tpu.core_type = #tpu.core_type<tc>, window_params = [{transform_indices = @transform_0, window_bounds = array<i64: 256, 16>}, {pipeline_mode = #tpu.pipeline_mode<synchronous>, transform_indices = @transform_1, window_bounds = array<i64: 3, 128, 128>}, {pipeline_mode = #tpu.pipeline_mode<synchronous>, transform_indices = @transform_2, window_bounds = array<i64: 3, 128>}, {transform_indices = @transform_3, window_bounds = array<i64: 256, 128>}]} {
    %c0 = arith.constant 0 : index
    %c0_0 = arith.constant 0 : index
    %0 = vector.load %arg1[%c0, %c0_0] : memref<256x16xf32, #tpu.memory_space<vmem>>, vector<256x16xf32>
    %c0_1 = arith.constant 0 : index
    %c0_2 = arith.constant 0 : index
    %c0_3 = arith.constant 0 : index
    %1 = vector.load %arg2[%c0_1, %c0_2, %c0_3] : memref<3x128x128xbf16, #tpu.memory_space<vmem>>, vector<1x16x128xbf16>
    %2 = vector.shape_cast %1 : vector<1x16x128xbf16> to vector<16x128xbf16>
    %3 = arith.truncf %0 : vector<256x16xf32> to vector<256x16xbf16>
    %cst = arith.constant dense<0.000000e+00> : vector<256x128xf32>
    %4 = tpu.matmul %3, %2, %cst {dimension_numbers = #tpu.dot_dimension_numbers<[1], [0], [0], [1], [0, 0, 1, 1], [], []>} : vector<256x16xbf16>, vector<16x128xbf16>, vector<256x128xf32> -> vector<256x128xf32>
    %c0_4 = arith.constant 0 : index
    %c0_5 = arith.constant 0 : index
    %5 = vector.load %arg3[%c0_4, %c0_5] : memref<3x128xf32, #tpu.memory_space<vmem>>, vector<1x128xf32>
    %6 = vector.broadcast %5 : vector<1x128xf32> to vector<256x128xf32>
    %7 = arith.addf %4, %6 : vector<256x128xf32>
    %cst_6 = arith.constant 0.000000e+00 : f32
    %8 = vector.broadcast %cst_6 : f32 to vector<256x128xf32>
    %9 = arith.maximumf %7, %8 : vector<256x128xf32>
    %c1 = arith.constant 1 : index
    %c0_7 = arith.constant 0 : index
    %c0_8 = arith.constant 0 : index
    %10 = vector.load %arg2[%c1, %c0_7, %c0_8] : memref<3x128x128xbf16, #tpu.memory_space<vmem>>, vector<1x128x128xbf16>
    %11 = vector.shape_cast %10 : vector<1x128x128xbf16> to vector<128x128xbf16>
    %12 = arith.truncf %9 : vector<256x128xf32> to vector<256x128xbf16>
    %cst_9 = arith.constant dense<0.000000e+00> : vector<256x128xf32>
    %13 = tpu.matmul %12, %11, %cst_9 {dimension_numbers = #tpu.dot_dimension_numbers<[1], [0], [0], [1], [0, 0, 1, 1], [], []>} : vector<256x128xbf16>, vector<128x128xbf16>, vector<256x128xf32> -> vector<256x128xf32>
    %c1_10 = arith.constant 1 : index
    %c0_11 = arith.constant 0 : index
    %14 = vector.load %arg3[%c1_10, %c0_11] : memref<3x128xf32, #tpu.memory_space<vmem>>, vector<1x128xf32>
    %15 = vector.broadcast %14 : vector<1x128xf32> to vector<256x128xf32>
    %16 = arith.addf %13, %15 : vector<256x128xf32>
    %cst_12 = arith.constant 0.000000e+00 : f32
    %17 = vector.broadcast %cst_12 : f32 to vector<256x128xf32>
    %18 = arith.maximumf %16, %17 : vector<256x128xf32>
    %c2 = arith.constant 2 : index
    %c0_13 = arith.constant 0 : index
    %c0_14 = arith.constant 0 : index
    %19 = vector.load %arg2[%c2, %c0_13, %c0_14] : memref<3x128x128xbf16, #tpu.memory_space<vmem>>, vector<1x128x128xbf16>
    %20 = vector.shape_cast %19 : vector<1x128x128xbf16> to vector<128x128xbf16>
    %21 = arith.truncf %18 : vector<256x128xf32> to vector<256x128xbf16>
    %cst_15 = arith.constant dense<0.000000e+00> : vector<256x128xf32>
    %22 = tpu.matmul %21, %20, %cst_15 {dimension_numbers = #tpu.dot_dimension_numbers<[1], [0], [0], [1], [0, 0, 1, 1], [], []>} : vector<256x128xbf16>, vector<128x128xbf16>, vector<256x128xf32> -> vector<256x128xf32>
    %c2_16 = arith.constant 2 : index
    %c0_17 = arith.constant 0 : index
    %23 = vector.load %arg3[%c2_16, %c0_17] : memref<3x128xf32, #tpu.memory_space<vmem>>, vector<1x128xf32>
    %24 = vector.broadcast %23 : vector<1x128xf32> to vector<256x128xf32>
    %25 = arith.addf %22, %24 : vector<256x128xf32>
    %c0_18 = arith.constant 0 : index
    %c0_19 = arith.constant 0 : index
    %26 = vector.load %arg4[%c0_18, %c0_19] : memref<256x128xf32, #tpu.memory_space<vmem>>, vector<256x128xf32>
    tpu.vector_store %arg4[%c0_18, %c0_19], %25 {strides = array<i32>} : memref<256x128xf32, #tpu.memory_space<vmem>>, vector<256x128xf32>,
    return
  }
  func.func @transform_0(%arg0: i32) -> (i32, i32) {
    %c0_i32 = arith.constant 0 : i32
    %c0_i32_0 = arith.constant 0 : i32
    return %arg0, %c0_i32 : i32, i32
  }
  func.func @transform_1(%arg0: i32) -> (i32, i32, i32) {
    %c0_i32 = arith.constant 0 : i32
    %c0_i32_0 = arith.constant 0 : i32
    %c0_i32_1 = arith.constant 0 : i32
    %c0_i32_2 = arith.constant 0 : i32
    return %c0_i32, %c0_i32_0, %c0_i32_1 : i32, i32, i32
  }
  func.func @transform_2(%arg0: i32) -> (i32, i32) {
    %c0_i32 = arith.constant 0 : i32
    %c0_i32_0 = arith.constant 0 : i32
    %c0_i32_1 = arith.constant 0 : i32
    return %c0_i32, %c0_i32_0 : i32, i32
  }
  func.func @transform_3(%arg0: i32) -> (i32, i32) {
    %c0_i32 = arith.constant 0 : i32
    %c0_i32_0 = arith.constant 0 : i32
    return %arg0, %c0_i32 : i32, i32
  }
}

</mosaic_0001>

<llo_original>
// kernel: neural_network_wps_forward.1
$region0: #{neural_network_wps_forward.1}
  #allocation0 [shape = 'u32[]', space=smem, size = 0x4, offset = 0x4, fixed_abs, tag = 'smem constant byte address 0x4 - core index']
  #allocation1 [shape = 'u32[144,128]{1,0:T(1,128)}', space=vmem, size = 0x12000, scoped, tag = 'internal scratch']
  %s0 = inlined_call_operand.vmem [shape: f32[512,16], index: 0, kind: input, shape index: {}]
  %s1 = inlined_call_operand.vmem [shape: bf16[3,128,128], index: 1, kind: input, shape index: {}]
  %s2 = inlined_call_operand.vmem [shape: f32[3,128], index: 2, kind: input, shape index: {}]
  %s3 = inlined_call_operand.vmem [shape: f32[512,128], index: 3, kind: output, shape index: {}]
  %s4 = sld [smem:[#allocation0]]
  $region45: #{neural_network_wps_forward.1} parent=0
    _
  %s6 = ssub.s32 1, %s4
  %s7 = scalar_select 0, %s6, %s4
  loop: start=0, step=1, limit=4
  $region2: #{neural_network_wps_forward.1} parent=0 // loop_pre_header
    _
  $region3: #{neural_network_wps_forward.1} parent=0 // loop_header
    %s9 = sphi 0, %s13
    %p10 = scmp.ge.s32.totalorder %s9, 4
    %s19 = sphi 0, %s21
    %s22 = sphi 0, %s19
    %s23 = sphi 0, %s22
    %s39 = sphi 0, %s23
    %s43 = sphi 0, %s43
    %s45 = sphi 0, %s43
    %s46 = sphi 0, %s45
    %s60 = sphi 0, %s46
    %s64 = sphi 0, %s64
    %s66 = sphi 0, %s64
    %s67 = sphi 0, %s66
    %s81 = sphi 0, %s67
    %s87 = sphi 0, %s89
    %s90 = sphi 0, %s87
    %s91 = sphi 0, %s90
    %s107 = sphi 0, %s91
  $region4: #{neural_network_wps_forward.1} parent=0 // loop_header_branch
    %12 = sbr.rel (%p10) target = $region8
  $region5: #{neural_network_wps_forward.1} parent=0 // loop_body
    %s14 = ssub.s32 %s9, 1
    %s15 = ssub.s32 %s9, 2
    %s16 = sadd.s32 %s9, 1
    %s17 = ssub.s32 %s9, %s16
    %p18 = scmp.eq.s32.totalorder %s17, 0
    %s20 = sadd.s32 %s19, 1
    %s21 = scalar_select %p18, %s19, %s20
    %p24 = pneg %p18
    %p25 = scmp.eq.s32.totalorder %s9, 1
    %p26 = por %p24, %p25
    %p27 = scmp.ne.s32.totalorder %s19, %s22
    %p28 = scmp.eq.s32.totalorder %s9, 0
    %p29 = por %p27, %p28
    %p30 = scmp.ne.s32.totalorder %s19, %s22
    %p31 = scmp.eq.s32.totalorder %s14, 1
    %p32 = por %p30, %p31
    %p33 = scmp.ne.s32.totalorder %s22, %s23
    %p34 = scmp.eq.s32.totalorder %s14, 0
    %p35 = por %p33, %p34
    %p36 = scmp.ne.s32.totalorder %s22, %s23
    %p37 = scmp.eq.s32.totalorder %s15, 1
    %p38 = por %p36, %p37
    %p40 = scmp.ne.s32.totalorder %s23, %s39
    %p41 = scmp.eq.s32.totalorder %s15, 0
    %p42 = por %p40, %p41
    %s44 = sadd.s32 %s43, 1
    %p47 = scmp.eq.s32.totalorder %s9, 1
    %p48 = scmp.ne.s32.totalorder %s43, %s45
    %p49 = scmp.eq.s32.totalorder %s9, 0
    %p50 = por %p48, %p49
    %p51 = scmp.ne.s32.totalorder %s43, %s45
    %p52 = scmp.eq.s32.totalorder %s14, 1
    %p53 = por %p51, %p52
    %p54 = scmp.ne.s32.totalorder %s45, %s46
    %p55 = scmp.eq.s32.totalorder %s14, 0
    %p56 = por %p54, %p55
    %p57 = scmp.ne.s32.totalorder %s45, %s46
    %p58 = scmp.eq.s32.totalorder %s15, 1
    %p59 = por %p57, %p58
    %p61 = scmp.ne.s32.totalorder %s46, %s60
    %p62 = scmp.eq.s32.totalorder %s15, 0
    %p63 = por %p61, %p62
    %s65 = sadd.s32 %s64, 1
    %p68 = scmp.eq.s32.totalorder %s9, 1
    %p69 = scmp.ne.s32.totalorder %s64, %s66
    %p70 = scmp.eq.s32.totalorder %s9, 0
    %p71 = por %p69, %p70
    %p72 = scmp.ne.s32.totalorder %s64, %s66
    %p73 = scmp.eq.s32.totalorder %s14, 1
    %p74 = por %p72, %p73
    %p75 = scmp.ne.s32.totalorder %s66, %s67
    %p76 = scmp.eq.s32.totalorder %s14, 0
    %p77 = por %p75, %p76
    %p78 = scmp.ne.s32.totalorder %s66, %s67
    %p79 = scmp.eq.s32.totalorder %s15, 1
    %p80 = por %p78, %p79
    %p82 = scmp.ne.s32.totalorder %s67, %s81
    %p83 = scmp.eq.s32.totalorder %s15, 0
    %p84 = por %p82, %p83
    %s85 = ssub.s32 %s9, %s16
    %p86 = scmp.eq.s32.totalorder %s85, 0
    %s88 = sadd.s32 %s87, 1
    %s89 = scalar_select %p86, %s87, %s88
    %p92 = pneg %p86
    %p93 = scmp.eq.s32.totalorder %s9, 1
    %p94 = por %p92, %p93
    %p95 = scmp.ne.s32.totalorder %s87, %s90
    %p96 = scmp.eq.s32.totalorder %s9, 0
    %p97 = por %p95, %p96
    %p98 = scmp.ne.s32.totalorder %s87, %s90
    %p99 = scmp.eq.s32.totalorder %s14, 1
    %p100 = por %p98, %p99
    %p101 = scmp.ne.s32.totalorder %s90, %s91
    %p102 = scmp.eq.s32.totalorder %s14, 0
    %p103 = por %p101, %p102
    %p104 = scmp.ne.s32.totalorder %s90, %s91
    %p105 = scmp.eq.s32.totalorder %s15, 1
    %p106 = por %p104, %p105
    %p108 = scmp.ne.s32.totalorder %s91, %s107
    %p109 = scmp.eq.s32.totalorder %s15, 0
    %p110 = por %p108, %p109
    %p111 = scmp.le.s32.totalorder 1, %s9
    %p112 = scmp.lt.s32.totalorder %s9, 3
    %p113 = pnand %p111, %p112
    %p114 = pneg %p113
    // Predicated region
    $region9: #{neural_network_wps_forward.1} parent=5 // pred_check
      _
    $region10: #{neural_network_wps_forward.1} parent=5 // pred_check_branch
      %116 = sbr.rel (%p113) target = $region12
    $region11: #{neural_network_wps_forward.1} parent=5 // pred_region
      %s117 = ssub.s32 %s9, 1
      // Predicated region
      $region13: #{neural_network_wps_forward.1} parent=11 // pred_check
        %p118 = pneg %p56
      $region14: #{neural_network_wps_forward.1} parent=11 // pred_check_branch
        %120 = sbr.rel (%p118) target = $region16
      $region15: #{neural_network_wps_forward.1} parent=11 // pred_region
        _
      $region16: #{neural_network_wps_forward.1} parent=11 // pred_fallthru
        _
      // Predicated region
      $region17: #{neural_network_wps_forward.1} parent=11 // pred_check
        %p121 = pneg %p77
      $region18: #{neural_network_wps_forward.1} parent=11 // pred_check_branch
        %123 = sbr.rel (%p121) target = $region20
      $region19: #{neural_network_wps_forward.1} parent=11 // pred_region
        _
      $region20: #{neural_network_wps_forward.1} parent=11 // pred_fallthru
        _
    $region12: #{neural_network_wps_forward.1} parent=5 // pred_fallthru
      _
    %p124 = scmp.lt.s32.totalorder %s9, 2
    // Predicated region
    $region21: #{neural_network_wps_forward.1} parent=5 // pred_check
      %p125 = pneg %p124
    $region22: #{neural_network_wps_forward.1} parent=5 // pred_check_branch
      %127 = sbr.rel (%p125) target = $region24
    $region23: #{neural_network_wps_forward.1} parent=5 // pred_region
      // Predicated region
      $region25: #{neural_network_wps_forward.1} parent=23 // pred_check
        %p128 = pneg %p29
      $region26: #{neural_network_wps_forward.1} parent=23 // pred_check_branch
        %130 = sbr.rel (%p128) target = $region28
      $region27: #{neural_network_wps_forward.1} parent=23 // pred_region
        %s131 = smul.u32 32, %s9
        %p132 = scmp.lt.s32.totalorder %s131, 63
        %s133 = scalar_select %p132, %s131, 63
        %s134 = smul.addr %s133, 8
        %s135 = scalar_lea.vmem %s0, %s134
        %s136 = smul.u32 32, %s9
      $region28: #{neural_network_wps_forward.1} parent=23 // pred_fallthru
        _
    $region24: #{neural_network_wps_forward.1} parent=5 // pred_fallthru
      _
    %p137 = scmp.le.s32.totalorder 1, %s9
    %p138 = scmp.lt.s32.totalorder %s9, 3
    %p139 = pnand %p137, %p138
    %p140 = pneg %p139
    // Predicated region
    $region29: #{neural_network_wps_forward.1} parent=5 // pred_check
      _
    $region30: #{neural_network_wps_forward.1} parent=5 // pred_check_branch
      %142 = sbr.rel (%p139) target = $region32
    $region31: #{neural_network_wps_forward.1} parent=5 // pred_region
      %s143 = ssub.s32 %s9, 1
      %s144 = smul.u32 32, %s14
      %p145 = scmp.lt.s32.totalorder %s144, 63
      %s146 = scalar_select %p145, %s144, 63
      %s147 = smul.addr %s146, 8
      %s148 = scalar_lea.vmem %s0, %s147
      %p149 = pneg %p35
      %p150 = pneg %p32
      %p151 = pneg %p56
      %p152 = pneg %p53
      %p153 = pneg %p77
      %p154 = pneg %p74
      %p155 = pneg %p103
      %p156 = pneg %p100
      %s157 = smul.u32 32, %s14
      %p158 = scmp.lt.s32.totalorder %s157, 63
      %s159 = scalar_select %p158, %s157, 63
      %s160 = smul.addr %s159, 8
      %s161 = scalar_lea.vmem %s3, %s160
      %s162 = smul.u32 32, %s14
      %p163 = scmp.lt.s32.totalorder %s162, 63
      %s164 = scalar_select %p163, %s162, 63
      %s165 = smul.addr %s164, 8
      %s166 = scalar_lea.vmem %s0, %s165
      %s167 = smul.u32 32, %s14
      %s168 = smul.u32 32, %s14
      %p169 = scmp.lt.s32.totalorder %s168, 63
      %s170 = scalar_select %p169, %s168, 63
      %s171 = smul.addr %s170, 8
      %s172 = scalar_lea.vmem %s3, %s171
      %s173 = smul.u32 32, %s14
      %v175 = vld [vmem:[%s166] sm:$0xff]
      %v176 = vld [vmem:[%s166 + $0x8] sm:$0xff]
      %v177 = vld [vmem:[%s166 + $0x10] sm:$0xff]
      %v178 = vld [vmem:[%s166 + $0x18] sm:$0xff]
      %v179 = vld [vmem:[%s166 + $0x20] sm:$0xff]
      %v180 = vld [vmem:[%s166 + $0x28] sm:$0xff]
      %v181 = vld [vmem:[%s166 + $0x30] sm:$0xff]
      %v182 = vld [vmem:[%s166 + $0x38] sm:$0xff]
      %v183 = vld [vmem:[%s166 + $0x40] sm:$0xff]
      %v184 = vld [vmem:[%s166 + $0x48] sm:$0xff]
      %v185 = vld [vmem:[%s166 + $0x50] sm:$0xff]
      %v186 = vld [vmem:[%s166 + $0x58] sm:$0xff]
      %v187 = vld [vmem:[%s166 + $0x60] sm:$0xff]
      %v188 = vld [vmem:[%s166 + $0x68] sm:$0xff]
      %v189 = vld [vmem:[%s166 + $0x70] sm:$0xff]
      %v190 = vld [vmem:[%s166 + $0x78] sm:$0xff]
      %v191 = vld [vmem:[%s166 + $0x80] sm:$0xff]
      %v192 = vld [vmem:[%s166 + $0x88] sm:$0xff]
      %v193 = vld [vmem:[%s166 + $0x90] sm:$0xff]
      %v194 = vld [vmem:[%s166 + $0x98] sm:$0xff]
      %v195 = vld [vmem:[%s166 + $0xa0] sm:$0xff]
      %v196 = vld [vmem:[%s166 + $0xa8] sm:$0xff]
      %v197 = vld [vmem:[%s166 + $0xb0] sm:$0xff]
      %v198 = vld [vmem:[%s166 + $0xb8] sm:$0xff]
      %v199 = vld [vmem:[%s166 + $0xc0] sm:$0xff]
      %v200 = vld [vmem:[%s166 + $0xc8] sm:$0xff]
      %v201 = vld [vmem:[%s166 + $0xd0] sm:$0xff]
      %v202 = vld [vmem:[%s166 + $0xd8] sm:$0xff]
      %v203 = vld [vmem:[%s166 + $0xe0] sm:$0xff]
      %v204 = vld [vmem:[%s166 + $0xe8] sm:$0xff]
      %v205 = vld [vmem:[%s166 + $0xf0] sm:$0xff]
      %v206 = vld [vmem:[%s166 + $0xf8] sm:$0xff]
      %v207 = vld [vmem:[%s1] sm:$0xf]
      %v208 = vld [vmem:[%s1 + $0x4] sm:$0xf]
      %v209 = vpack.c.bf16 %v176, %v175
      %v210 = vpack.c.bf16 %v178, %v177
      %v211 = vpack.c.bf16 %v180, %v179
      %v212 = vpack.c.bf16 %v182, %v181
      %v213 = vpack.c.bf16 %v184, %v183
      %v214 = vpack.c.bf16 %v186, %v185
      %v215 = vpack.c.bf16 %v188, %v187
      %v216 = vpack.c.bf16 %v190, %v189
      %v217 = vpack.c.bf16 %v192, %v191
      %v218 = vpack.c.bf16 %v194, %v193
      %v219 = vpack.c.bf16 %v196, %v195
      %v220 = vpack.c.bf16 %v198, %v197
      %v221 = vpack.c.bf16 %v200, %v199
      %v222 = vpack.c.bf16 %v202, %v201
      %v223 = vpack.c.bf16 %v204, %v203
      %v224 = vpack.c.bf16 %v206, %v205
      %v225 = vld [vmem:[%s2] sm:$0x1]
      %v226 = vlaneseq
      %v227 = vshrl.u32 %v226, 7
      %v228 = vsub.s32 0, %v227
      %v229 = vrot.slane %v225, %v228
      %v232 = vunpack.c.l.b16 %v207
      %v233 = vunpack.c.l.b16 %v208
      %v234 = vpack.c.b16 %v233, %v232
      %vm236 = vcmask 130048
      %v238 = vsel %vm236, %v209, 0
      %v241 = vsel %vm236, %v210, 0
      %v244 = vsel %vm236, %v211, 0
      %v247 = vsel %vm236, %v212, 0
      %v250 = vsel %vm236, %v213, 0
      %v253 = vsel %vm236, %v214, 0
      %v256 = vsel %vm236, %v215, 0
      %v259 = vsel %vm236, %v216, 0
      %v262 = vsel %vm236, %v217, 0
      %v265 = vsel %vm236, %v218, 0
      %v268 = vsel %vm236, %v219, 0
      %v271 = vsel %vm236, %v220, 0
      %v274 = vsel %vm236, %v221, 0
      %v277 = vsel %vm236, %v222, 0
      %v280 = vsel %vm236, %v223, 0
      %v283 = vsel %vm236, %v224, 0
      %285 = vmatprep.subr.bf16.mxu0 0
      %286 = vmatpush1.bf16.msra.mxu0 %v234
      %287 = vmatprep.subr.bf16.mxu0 0
      %288 = vmatpush1.bf16.msra.mxu0 0
      %289 = vmatprep.subr.bf16.mxu0 0
      %290 = vmatpush1.bf16.msra.mxu0 0
      %291 = vmatprep.subr.bf16.mxu0 0
      %292 = vmatpush1.bf16.msra.mxu0 0
      %293 = vmatprep.subr.bf16.mxu0 0
      %294 = vmatpush1.bf16.msra.mxu0 0
      %295 = vmatprep.subr.bf16.mxu0 0
      %296 = vmatpush1.bf16.msra.mxu0 0
      %297 = vmatprep.subr.bf16.mxu0 0
      %298 = vmatpush1.bf16.msra.mxu0 0
      %299 = vmatprep.subr.bf16.mxu0 0
      %300 = vmatpush1.bf16.msra.mxu0 0
      %301 = vmatprep.subr.bf16.mxu0 0
      %302 = vmatpush1.bf16.msra.mxu0 0
      %303 = vmatprep.subr.bf16.mxu0 0
      %304 = vmatpush1.bf16.msra.mxu0 0
      %305 = vmatprep.subr.bf16.mxu0 0
      %306 = vmatpush1.bf16.msra.mxu0 0
      %307 = vmatprep.subr.bf16.mxu0 0
      %308 = vmatpush1.bf16.msra.mxu0 0
      %309 = vmatprep.subr.bf16.mxu0 0
      %310 = vmatpush1.bf16.msra.mxu0 0
      %311 = vmatprep.subr.bf16.mxu0 0
      %312 = vmatpush1.bf16.msra.mxu0 0
      %313 = vmatprep.subr.bf16.mxu0 0
      %314 = vmatpush1.bf16.msra.mxu0 0
      %315 = vmatprep.subr.bf16.mxu0 0
      %316 = vmatpush1.bf16.msra.mxu0 0
      %317 = vmatprep.mubr.bf16.mxu0 0
      %318 = vmatmul.mubr.bf16.gmra.mrb[0].mxu0 %v238
      %v319 = vpop.f32.mrb[0].mxu0
      %v320 = vadd.f32 %v229, %v319
      %v321 = vpop.f32.mrb[0].mxu0
      %v322 = vpop.f32.mrb[0].mxu0
      %v323 = vadd.f32 %v229, %v322
      %v324 = vpop.f32.mrb[0].mxu0
      %325 = vmatprep.mubr.bf16.mxu0 0
      %326 = vmatmul.mubr.bf16.gmra.mrb[0].mxu0 %v241
      %v327 = vpop.f32.mrb[0].mxu0
      %v328 = vadd.f32 %v229, %v327
      %v329 = vpop.f32.mrb[0].mxu0
      %v330 = vpop.f32.mrb[0].mxu0
      %v331 = vadd.f32 %v229, %v330
      %v332 = vpop.f32.mrb[0].mxu0
      %333 = vmatprep.mubr.bf16.mxu0 0
      %334 = vmatmul.mubr.bf16.gmra.mrb[0].mxu0 %v244
      %v335 = vpop.f32.mrb[0].mxu0
      %v336 = vadd.f32 %v229, %v335
      %v337 = vpop.f32.mrb[0].mxu0
      %v338 = vpop.f32.mrb[0].mxu0
      %v339 = vadd.f32 %v229, %v338
      %v340 = vpop.f32.mrb[0].mxu0
      %341 = vmatprep.mubr.bf16.mxu0 0
      %342 = vmatmul.mubr.bf16.gmra.mrb[0].mxu0 %v247
      %v343 = vpop.f32.mrb[0].mxu0
      %v344 = vadd.f32 %v229, %v343
      %v345 = vpop.f32.mrb[0].mxu0
      %v346 = vpop.f32.mrb[0].mxu0
      %v347 = vadd.f32 %v229, %v346
      %v348 = vpop.f32.mrb[0].mxu0
      %349 = vmatprep.mubr.bf16.mxu0 0
      %350 = vmatmul.mubr.bf16.gmra.mrb[0].mxu0 %v250
      %v351 = vpop.f32.mrb[0].mxu0
      %v352 = vadd.f32 %v229, %v351
      %v353 = vpop.f32.mrb[0].mxu0
      %v354 = vpop.f32.mrb[0].mxu0
      %v355 = vadd.f32 %v229, %v354
      %v356 = vpop.f32.mrb[0].mxu0
      %357 = vmatprep.mubr.bf16.mxu0 0
      %358 = vmatmul.mubr.bf16.gmra.mrb[0].mxu0 %v253
      %v359 = vpop.f32.mrb[0].mxu0
      %v360 = vadd.f32 %v229, %v359
      %v361 = vpop.f32.mrb[0].mxu0
      %v362 = vpop.f32.mrb[0].mxu0
      %v363 = vadd.f32 %v229, %v362
      %v364 = vpop.f32.mrb[0].mxu0
      %365 = vmatprep.mubr.bf16.mxu0 0
      %366 = vmatmul.mubr.bf16.gmra.mrb[0].mxu0 %v256
      %v367 = vpop.f32.mrb[0].mxu0
      %v368 = vadd.f32 %v229, %v367
      %v369 = vpop.f32.mrb[0].mxu0
      %v370 = vpop.f32.mrb[0].mxu0
      %v371 = vadd.f32 %v229, %v370
      %v372 = vpop.f32.mrb[0].mxu0
      %373 = vmatprep.mubr.bf16.mxu0 0
      %374 = vmatmul.mubr.bf16.gmra.mrb[0].mxu0 %v259
      %v375 = vpop.f32.mrb[0].mxu0
      %v376 = vadd.f32 %v229, %v375
      %v377 = vpop.f32.mrb[0].mxu0
      %v378 = vpop.f32.mrb[0].mxu0
      %v379 = vadd.f32 %v229, %v378
      %v380 = vpop.f32.mrb[0].mxu0
      %381 = vmatprep.mubr.bf16.mxu0 0
      %382 = vmatmul.mubr.bf16.gmra.mrb[0].mxu0 %v262
      %v383 = vpop.f32.mrb[0].mxu0
      %v384 = vadd.f32 %v229, %v383
      %v385 = vpop.f32.mrb[0].mxu0
      %v386 = vpop.f32.mrb[0].mxu0
      %v387 = vadd.f32 %v229, %v386
      %v388 = vpop.f32.mrb[0].mxu0
      %389 = vmatprep.mubr.bf16.mxu0 0
      %390 = vmatmul.mubr.bf16.gmra.mrb[0].mxu0 %v265
      %v391 = vpop.f32.mrb[0].mxu0
      %v392 = vadd.f32 %v229, %v391
      %v393 = vpop.f32.mrb[0].mxu0
      %v394 = vpop.f32.mrb[0].mxu0
      %v395 = vadd.f32 %v229, %v394
      %v396 = vpop.f32.mrb[0].mxu0
      %397 = vmatprep.mubr.bf16.mxu0 0
      %398 = vmatmul.mubr.bf16.gmra.mrb[0].mxu0 %v268
      %v399 = vpop.f32.mrb[0].mxu0
      %v400 = vadd.f32 %v229, %v399
      %v401 = vpop.f32.mrb[0].mxu0
      %v402 = vpop.f32.mrb[0].mxu0
      %v403 = vadd.f32 %v229, %v402
      %v404 = vpop.f32.mrb[0].mxu0
      %405 = vmatprep.mubr.bf16.mxu0 0
      %406 = vmatmul.mubr.bf16.gmra.mrb[0].mxu0 %v271
      %v407 = vpop.f32.mrb[0].mxu0
      %v408 = vadd.f32 %v229, %v407
      %v409 = vpop.f32.mrb[0].mxu0
      %v410 = vpop.f32.mrb[0].mxu0
      %v411 = vadd.f32 %v229, %v410
      %v412 = vpop.f32.mrb[0].mxu0
      %413 = vmatprep.mubr.bf16.mxu0 0
      %414 = vmatmul.mubr.bf16.gmra.mrb[0].mxu0 %v274
      %v415 = vpop.f32.mrb[0].mxu0
      %v416 = vadd.f32 %v229, %v415
      %v417 = vpop.f32.mrb[0].mxu0
      %v418 = vpop.f32.mrb[0].mxu0
      %v419 = vadd.f32 %v229, %v418
      %v420 = vpop.f32.mrb[0].mxu0
      %421 = vmatprep.mubr.bf16.mxu0 0
      %422 = vmatmul.mubr.bf16.gmra.mrb[0].mxu0 %v277
      %v423 = vpop.f32.mrb[0].mxu0
      %v424 = vadd.f32 %v229, %v423
      %v425 = vpop.f32.mrb[0].mxu0
      %v426 = vpop.f32.mrb[0].mxu0
      %v427 = vadd.f32 %v229, %v426
      %v428 = vpop.f32.mrb[0].mxu0
      %429 = vmatprep.mubr.bf16.mxu0 0
      %430 = vmatmul.mubr.bf16.gmra.mrb[0].mxu0 %v280
      %v431 = vpop.f32.mrb[0].mxu0
      %v432 = vadd.f32 %v229, %v431
      %v433 = vpop.f32.mrb[0].mxu0
      %v434 = vpop.f32.mrb[0].mxu0
      %v435 = vadd.f32 %v229, %v434
      %v436 = vpop.f32.mrb[0].mxu0
      %437 = vmatprep.mubr.bf16.mxu0 0
      %438 = vmatmul.mubr.bf16.gmra.mrb[0].mxu0 %v283
      %v439 = vpop.f32.mrb[0].mxu0
      %v440 = vadd.f32 %v229, %v439
      %v441 = vpop.f32.mrb[0].mxu0
      %v442 = vpop.f32.mrb[0].mxu0
      %v443 = vadd.f32 %v229, %v442
      %v444 = vpop.f32.mrb[0].mxu0
      %445 = vdwg.mxu0
      %v446 = vmax.f32 %v320, 0.0
      %v447 = vmax.f32 %v323, 0.0
      %v448 = vmax.f32 %v328, 0.0
      %v449 = vmax.f32 %v331, 0.0
      %v450 = vmax.f32 %v336, 0.0
      %v451 = vmax.f32 %v339, 0.0
      %v452 = vmax.f32 %v344, 0.0
      %v453 = vmax.f32 %v347, 0.0
      %v454 = vmax.f32 %v352, 0.0
      %v455 = vmax.f32 %v355, 0.0
      %v456 = vmax.f32 %v360, 0.0
      %v457 = vmax.f32 %v363, 0.0
      %v458 = vmax.f32 %v368, 0.0
      %v459 = vmax.f32 %v371, 0.0
      %v460 = vmax.f32 %v376, 0.0
      %v461 = vmax.f32 %v379, 0.0
      %v462 = vmax.f32 %v384, 0.0
      %v463 = vmax.f32 %v387, 0.0
      %v464 = vmax.f32 %v392, 0.0
      %v465 = vmax.f32 %v395, 0.0
      %v466 = vmax.f32 %v400, 0.0
      %v467 = vmax.f32 %v403, 0.0
      %v468 = vmax.f32 %v408, 0.0
      %v469 = vmax.f32 %v411, 0.0
      %v470 = vmax.f32 %v416, 0.0
      %v471 = vmax.f32 %v419, 0.0
      %v472 = vmax.f32 %v424, 0.0
      %v473 = vmax.f32 %v427, 0.0
      %v474 = vmax.f32 %v432, 0.0
      %v475 = vmax.f32 %v435, 0.0
      %v476 = vmax.f32 %v440, 0.0
      %v477 = vmax.f32 %v443, 0.0
      %s478 = scalar_lea.vmem %s1, 64
      %v479 = vld [vmem:[%s478] sm:$0xf]
      %v480 = vld [vmem:[%s478 + $0x4] sm:$0xf]
      %v481 = vld [vmem:[%s478 + $0x8] sm:$0xf]
      %v482 = vld [vmem:[%s478 + $0xc] sm:$0xf]
      %v483 = vld [vmem:[%s478 + $0x10] sm:$0xf]
      %v484 = vld [vmem:[%s478 + $0x14] sm:$0xf]
      %v485 = vld [vmem:[%s478 + $0x18] sm:$0xf]
      %v486 = vld [vmem:[%s478 + $0x1c] sm:$0xf]
      %v487 = vld [vmem:[%s478 + $0x20] sm:$0xf]
      %v488 = vld [vmem:[%s478 + $0x24] sm:$0xf]
      %v489 = vld [vmem:[%s478 + $0x28] sm:$0xf]
      %v490 = vld [vmem:[%s478 + $0x2c] sm:$0xf]
      %v491 = vld [vmem:[%s478 + $0x30] sm:$0xf]
      %v492 = vld [vmem:[%s478 + $0x34] sm:$0xf]
      %v493 = vld [vmem:[%s478 + $0x38] sm:$0xf]
      %v494 = vld [vmem:[%s478 + $0x3c] sm:$0xf]
      %v495 = vpack.c.bf16 %v447, %v446
      %v496 = vpack.c.bf16 %v449, %v448
      %v497 = vpack.c.bf16 %v451, %v450
      %v498 = vpack.c.bf16 %v453, %v452
      %v499 = vpack.c.bf16 %v455, %v454
      %v500 = vpack.c.bf16 %v457, %v456
      %v501 = vpack.c.bf16 %v459, %v458
      %v502 = vpack.c.bf16 %v461, %v460
      %v503 = vpack.c.bf16 %v463, %v462
      %v504 = vpack.c.bf16 %v465, %v464
      %v505 = vpack.c.bf16 %v467, %v466
      %v506 = vpack.c.bf16 %v469, %v468
      %v507 = vpack.c.bf16 %v471, %v470
      %v508 = vpack.c.bf16 %v473, %v472
      %v509 = vpack.c.bf16 %v475, %v474
      %v510 = vpack.c.bf16 %v477, %v476
      %v511 = vld [vmem:[%s2 + $0x1] sm:$0x1]
      %v512 = vlaneseq
      %v513 = vshrl.u32 %v512, 7
      %v514 = vsub.s32 0, %v513
      %v515 = vrot.slane %v511, %v514
      %v532 = vunpack.c.l.b16 %v479
      %v533 = vunpack.c.l.b16 %v480
      %v534 = vunpack.c.l.b16 %v481
      %v535 = vunpack.c.l.b16 %v482
      %v536 = vunpack.c.l.b16 %v483
      %v537 = vunpack.c.l.b16 %v484
      %v538 = vunpack.c.l.b16 %v485
      %v539 = vunpack.c.l.b16 %v486
      %v540 = vunpack.c.l.b16 %v487
      %v541 = vunpack.c.l.b16 %v488
      %v542 = vunpack.c.l.b16 %v489
      %v543 = vunpack.c.l.b16 %v490
      %v544 = vunpack.c.l.b16 %v491
      %v545 = vunpack.c.l.b16 %v492
      %v546 = vunpack.c.l.b16 %v493
      %v547 = vunpack.c.l.b16 %v494
      %v548 = vpack.c.b16 %v533, %v532
      %v549 = vpack.c.b16 %v535, %v534
      %v550 = vpack.c.b16 %v537, %v536
      %v551 = vpack.c.b16 %v539, %v538
      %v552 = vpack.c.b16 %v541, %v540
      %v553 = vpack.c.b16 %v543, %v542
      %v554 = vpack.c.b16 %v545, %v544
      %v555 = vpack.c.b16 %v547, %v546
      %564 = vmatprep.subr.bf16.mxu0 0
      %565 = vmatpush1.bf16.msra.mxu0 %v548
      %566 = vmatprep.subr.bf16.mxu0 0
      %567 = vmatpush1.bf16.msra.mxu0 %v549
      %568 = vmatprep.subr.bf16.mxu0 0
      %569 = vmatpush1.bf16.msra.mxu0 %v550
      %570 = vmatprep.subr.bf16.mxu0 0
      %571 = vmatpush1.bf16.msra.mxu0 %v551
      %572 = vmatprep.subr.bf16.mxu0 0
      %573 = vmatpush1.bf16.msra.mxu0 %v552
      %574 = vmatprep.subr.bf16.mxu0 0
      %575 = vmatpush1.bf16.msra.mxu0 %v553
      %576 = vmatprep.subr.bf16.mxu0 0
      %577 = vmatpush1.bf16.msra.mxu0 %v554
      %578 = vmatprep.subr.bf16.mxu0 0
      %579 = vmatpush1.bf16.msra.mxu0 %v555
      %580 = vmatprep.subr.bf16.mxu0 0
      %581 = vmatpush1.bf16.msra.mxu0 0
      %582 = vmatprep.subr.bf16.mxu0 0
      %583 = vmatpush1.bf16.msra.mxu0 0
      %584 = vmatprep.subr.bf16.mxu0 0
      %585 = vmatpush1.bf16.msra.mxu0 0
      %586 = vmatprep.subr.bf16.mxu0 0
      %587 = vmatpush1.bf16.msra.mxu0 0
      %588 = vmatprep.subr.bf16.mxu0 0
      %589 = vmatpush1.bf16.msra.mxu0 0
      %590 = vmatprep.subr.bf16.mxu0 0
      %591 = vmatpush1.bf16.msra.mxu0 0
      %592 = vmatprep.subr.bf16.mxu0 0
      %593 = vmatpush1.bf16.msra.mxu0 0
      %594 = vmatprep.subr.bf16.mxu0 0
      %595 = vmatpush1.bf16.msra.mxu0 0
      %596 = vmatprep.mubr.bf16.mxu0 0
      %597 = vmatmul.mubr.bf16.gmra.mrb[0].mxu0 %v495
      %v598 = vpop.f32.mrb[0].mxu0
      %v599 = vadd.f32 %v515, %v598
      %v600 = vpop.f32.mrb[0].mxu0
      %v601 = vpop.f32.mrb[0].mxu0
      %v602 = vadd.f32 %v515, %v601
      %v603 = vpop.f32.mrb[0].mxu0
      %604 = vmatprep.mubr.bf16.mxu0 0
      %605 = vmatmul.mubr.bf16.gmra.mrb[0].mxu0 %v496
      %v606 = vpop.f32.mrb[0].mxu0
      %v607 = vadd.f32 %v515, %v606
      %v608 = vpop.f32.mrb[0].mxu0
      %v609 = vpop.f32.mrb[0].mxu0
      %v610 = vadd.f32 %v515, %v609
      %v611 = vpop.f32.mrb[0].mxu0
      %612 = vmatprep.mubr.bf16.mxu0 0
      %613 = vmatmul.mubr.bf16.gmra.mrb[0].mxu0 %v497
      %v614 = vpop.f32.mrb[0].mxu0
      %v615 = vadd.f32 %v515, %v614
      %v616 = vpop.f32.mrb[0].mxu0
      %v617 = vpop.f32.mrb[0].mxu0
      %v618 = vadd.f32 %v515, %v617
      %v619 = vpop.f32.mrb[0].mxu0
      %620 = vmatprep.mubr.bf16.mxu0 0
      %621 = vmatmul.mubr.bf16.gmra.mrb[0].mxu0 %v498
      %v622 = vpop.f32.mrb[0].mxu0
      %v623 = vadd.f32 %v515, %v622
      %v624 = vpop.f32.mrb[0].mxu0
      %v625 = vpop.f32.mrb[0].mxu0
      %v626 = vadd.f32 %v515, %v625
      %v627 = vpop.f32.mrb[0].mxu0
      %628 = vmatprep.mubr.bf16.mxu0 0
      %629 = vmatmul.mubr.bf16.gmra.mrb[0].mxu0 %v499
      %v630 = vpop.f32.mrb[0].mxu0
      %v631 = vadd.f32 %v515, %v630
      %v632 = vpop.f32.mrb[0].mxu0
      %v633 = vpop.f32.mrb[0].mxu0
      %v634 = vadd.f32 %v515, %v633
      %v635 = vpop.f32.mrb[0].mxu0
      %636 = vmatprep.mubr.bf16.mxu0 0
      %637 = vmatmul.mubr.bf16.gmra.mrb[0].mxu0 %v500
      %v638 = vpop.f32.mrb[0].mxu0
      %v639 = vadd.f32 %v515, %v638
      %v640 = vpop.f32.mrb[0].mxu0
      %v641 = vpop.f32.mrb[0].mxu0
      %v642 = vadd.f32 %v515, %v641
      %v643 = vpop.f32.mrb[0].mxu0
      %644 = vmatprep.mubr.bf16.mxu0 0
      %645 = vmatmul.mubr.bf16.gmra.mrb[0].mxu0 %v501
      %v646 = vpop.f32.mrb[0].mxu0
      %v647 = vadd.f32 %v515, %v646
      %v648 = vpop.f32.mrb[0].mxu0
      %v649 = vpop.f32.mrb[0].mxu0
      %v650 = vadd.f32 %v515, %v649
      %v651 = vpop.f32.mrb[0].mxu0
      %652 = vmatprep.mubr.bf16.mxu0 0
      %653 = vmatmul.mubr.bf16.gmra.mrb[0].mxu0 %v502
      %v654 = vpop.f32.mrb[0].mxu0
      %v655 = vadd.f32 %v515, %v654
      %v656 = vpop.f32.mrb[0].mxu0
      %v657 = vpop.f32.mrb[0].mxu0
      %v658 = vadd.f32 %v515, %v657
      %v659 = vpop.f32.mrb[0].mxu0
      %660 = vmatprep.mubr.bf16.mxu0 0
      %661 = vmatmul.mubr.bf16.gmra.mrb[0].mxu0 %v503
      %v662 = vpop.f32.mrb[0].mxu0
      %v663 = vadd.f32 %v515, %v662
      %v664 = vpop.f32.mrb[0].mxu0
      %v665 = vpop.f32.mrb[0].mxu0
      %v666 = vadd.f32 %v515, %v665
      %v667 = vpop.f32.mrb[0].mxu0
      %668 = vmatprep.mubr.bf16.mxu0 0
      %669 = vmatmul.mubr.bf16.gmra.mrb[0].mxu0 %v504
      %v670 = vpop.f32.mrb[0].mxu0
      %v671 = vadd.f32 %v515, %v670
      %v672 = vpop.f32.mrb[0].mxu0
      %v673 = vpop.f32.mrb[0].mxu0
      %v674 = vadd.f32 %v515, %v673
      %v675 = vpop.f32.mrb[0].mxu0
      %676 = vmatprep.mubr.bf16.mxu0 0
      %677 = vmatmul.mubr.bf16.gmra.mrb[0].mxu0 %v505
      %v678 = vpop.f32.mrb[0].mxu0
      %v679 = vadd.f32 %v515, %v678
      %v680 = vpop.f32.mrb[0].mxu0
      %v681 = vpop.f32.mrb[0].mxu0
      %v682 = vadd.f32 %v515, %v681
      %v683 = vpop.f32.mrb[0].mxu0
      %684 = vmatprep.mubr.bf16.mxu0 0
      %685 = vmatmul.mubr.bf16.gmra.mrb[0].mxu0 %v506
      %v686 = vpop.f32.mrb[0].mxu0
      %v687 = vadd.f32 %v515, %v686
      %v688 = vpop.f32.mrb[0].mxu0
      %v689 = vpop.f32.mrb[0].mxu0
      %v690 = vadd.f32 %v515, %v689
      %v691 = vpop.f32.mrb[0].mxu0
      %692 = vmatprep.mubr.bf16.mxu0 0
      %693 = vmatmul.mubr.bf16.gmra.mrb[0].mxu0 %v507
      %v694 = vpop.f32.mrb[0].mxu0
      %v695 = vadd.f32 %v515, %v694
      %v696 = vpop.f32.mrb[0].mxu0
      %v697 = vpop.f32.mrb[0].mxu0
      %v698 = vadd.f32 %v515, %v697
      %v699 = vpop.f32.mrb[0].mxu0
      %700 = vmatprep.mubr.bf16.mxu0 0
      %701 = vmatmul.mubr.bf16.gmra.mrb[0].mxu0 %v508
      %v702 = vpop.f32.mrb[0].mxu0
      %v703 = vadd.f32 %v515, %v702
      %v704 = vpop.f32.mrb[0].mxu0
      %v705 = vpop.f32.mrb[0].mxu0
      %v706 = vadd.f32 %v515, %v705
      %v707 = vpop.f32.mrb[0].mxu0
      %708 = vmatprep.mubr.bf16.mxu0 0
      %709 = vmatmul.mubr.bf16.gmra.mrb[0].mxu0 %v509
      %v710 = vpop.f32.mrb[0].mxu0
      %v711 = vadd.f32 %v515, %v710
      %v712 = vpop.f32.mrb[0].mxu0
      %v713 = vpop.f32.mrb[0].mxu0
      %v714 = vadd.f32 %v515, %v713
      %v715 = vpop.f32.mrb[0].mxu0
      %716 = vmatprep.mubr.bf16.mxu0 0
      %717 = vmatmul.mubr.bf16.gmra.mrb[0].mxu0 %v510
      %v718 = vpop.f32.mrb[0].mxu0
      %v719 = vadd.f32 %v515, %v718
      %v720 = vpop.f32.mrb[0].mxu0
      %v721 = vpop.f32.mrb[0].mxu0
      %v722 = vadd.f32 %v515, %v721
      %v723 = vpop.f32.mrb[0].mxu0
      %724 = vdwg.mxu0
      %v725 = vmax.f32 %v599, 0.0
      %v726 = vmax.f32 %v602, 0.0
      %v727 = vmax.f32 %v607, 0.0
      %v728 = vmax.f32 %v610, 0.0
      %v729 = vmax.f32 %v615, 0.0
      %v730 = vmax.f32 %v618, 0.0
      %v731 = vmax.f32 %v623, 0.0
      %v732 = vmax.f32 %v626, 0.0
      %v733 = vmax.f32 %v631, 0.0
      %v734 = vmax.f32 %v634, 0.0
      %v735 = vmax.f32 %v639, 0.0
      %v736 = vmax.f32 %v642, 0.0
      %v737 = vmax.f32 %v647, 0.0
      %v738 = vmax.f32 %v650, 0.0
      %v739 = vmax.f32 %v655, 0.0
      %v740 = vmax.f32 %v658, 0.0
      %v741 = vmax.f32 %v663, 0.0
      %v742 = vmax.f32 %v666, 0.0
      %v743 = vmax.f32 %v671, 0.0
      %v744 = vmax.f32 %v674, 0.0
      %v745 = vmax.f32 %v679, 0.0
      %v746 = vmax.f32 %v682, 0.0
      %v747 = vmax.f32 %v687, 0.0
      %v748 = vmax.f32 %v690, 0.0
      %v749 = vmax.f32 %v695, 0.0
      %v750 = vmax.f32 %v698, 0.0
      %v751 = vmax.f32 %v703, 0.0
      %v752 = vmax.f32 %v706, 0.0
      %v753 = vmax.f32 %v711, 0.0
      %v754 = vmax.f32 %v714, 0.0
      %v755 = vmax.f32 %v719, 0.0
      %v756 = vmax.f32 %v722, 0.0
      %s757 = scalar_lea.vmem %s1, 128
      %v758 = vld [vmem:[%s757] sm:$0xf]
      %v759 = vld [vmem:[%s757 + $0x4] sm:$0xf]
      %v760 = vld [vmem:[%s757 + $0x8] sm:$0xf]
      %v761 = vld [vmem:[%s757 + $0xc] sm:$0xf]
      %v762 = vld [vmem:[%s757 + $0x10] sm:$0xf]
      %v763 = vld [vmem:[%s757 + $0x14] sm:$0xf]
      %v764 = vld [vmem:[%s757 + $0x18] sm:$0xf]
      %v765 = vld [vmem:[%s757 + $0x1c] sm:$0xf]
      %v766 = vld [vmem:[%s757 + $0x20] sm:$0xf]
      %v767 = vld [vmem:[%s757 + $0x24] sm:$0xf]
      %v768 = vld [vmem:[%s757 + $0x28] sm:$0xf]
      %v769 = vld [vmem:[%s757 + $0x2c] sm:$0xf]
      %v770 = vld [vmem:[%s757 + $0x30] sm:$0xf]
      %v771 = vld [vmem:[%s757 + $0x34] sm:$0xf]
      %v772 = vld [vmem:[%s757 + $0x38] sm:$0xf]
      %v773 = vld [vmem:[%s757 + $0x3c] sm:$0xf]
      %v774 = vpack.c.bf16 %v726, %v725
      %v775 = vpack.c.bf16 %v728, %v727
      %v776 = vpack.c.bf16 %v730, %v729
      %v777 = vpack.c.bf16 %v732, %v731
      %v778 = vpack.c.bf16 %v734, %v733
      %v779 = vpack.c.bf16 %v736, %v735
      %v780 = vpack.c.bf16 %v738, %v737
      %v781 = vpack.c.bf16 %v740, %v739
      %v782 = vpack.c.bf16 %v742, %v741
      %v783 = vpack.c.bf16 %v744, %v743
      %v784 = vpack.c.bf16 %v746, %v745
      %v785 = vpack.c.bf16 %v748, %v747
      %v786 = vpack.c.bf16 %v750, %v749
      %v787 = vpack.c.bf16 %v752, %v751
      %v788 = vpack.c.bf16 %v754, %v753
      %v789 = vpack.c.bf16 %v756, %v755
      %v790 = vld [vmem:[%s2 + $0x2] sm:$0x1]
      %v791 = vlaneseq
      %v792 = vshrl.u32 %v791, 7
      %v793 = vsub.s32 0, %v792
      %v794 = vrot.slane %v790, %v793
      %v811 = vunpack.c.l.b16 %v758
      %v812 = vunpack.c.l.b16 %v759
      %v813 = vunpack.c.l.b16 %v760
      %v814 = vunpack.c.l.b16 %v761
      %v815 = vunpack.c.l.b16 %v762
      %v816 = vunpack.c.l.b16 %v763
      %v817 = vunpack.c.l.b16 %v764
      %v818 = vunpack.c.l.b16 %v765
      %v819 = vunpack.c.l.b16 %v766
      %v820 = vunpack.c.l.b16 %v767
      %v821 = vunpack.c.l.b16 %v768
      %v822 = vunpack.c.l.b16 %v769
      %v823 = vunpack.c.l.b16 %v770
      %v824 = vunpack.c.l.b16 %v771
      %v825 = vunpack.c.l.b16 %v772
      %v826 = vunpack.c.l.b16 %v773
      %v827 = vpack.c.b16 %v812, %v811
      %v828 = vpack.c.b16 %v814, %v813
      %v829 = vpack.c.b16 %v816, %v815
      %v830 = vpack.c.b16 %v818, %v817
      %v831 = vpack.c.b16 %v820, %v819
      %v832 = vpack.c.b16 %v822, %v821
      %v833 = vpack.c.b16 %v824, %v823
      %v834 = vpack.c.b16 %v826, %v825
      %843 = vmatprep.subr.bf16.mxu0 0
      %844 = vmatpush1.bf16.msra.mxu0 %v827
      %845 = vmatprep.subr.bf16.mxu0 0
      %846 = vmatpush1.bf16.msra.mxu0 %v828
      %847 = vmatprep.subr.bf16.mxu0 0
      %848 = vmatpush1.bf16.msra.mxu0 %v829
      %849 = vmatprep.subr.bf16.mxu0 0
      %850 = vmatpush1.bf16.msra.mxu0 %v830
      %851 = vmatprep.subr.bf16.mxu0 0
      %852 = vmatpush1.bf16.msra.mxu0 %v831
      %853 = vmatprep.subr.bf16.mxu0 0
      %854 = vmatpush1.bf16.msra.mxu0 %v832
      %855 = vmatprep.subr.bf16.mxu0 0
      %856 = vmatpush1.bf16.msra.mxu0 %v833
      %857 = vmatprep.subr.bf16.mxu0 0
      %858 = vmatpush1.bf16.msra.mxu0 %v834
      %859 = vmatprep.subr.bf16.mxu0 0
      %860 = vmatpush1.bf16.msra.mxu0 0
      %861 = vmatprep.subr.bf16.mxu0 0
      %862 = vmatpush1.bf16.msra.mxu0 0
      %863 = vmatprep.subr.bf16.mxu0 0
      %864 = vmatpush1.bf16.msra.mxu0 0
      %865 = vmatprep.subr.bf16.mxu0 0
      %866 = vmatpush1.bf16.msra.mxu0 0
      %867 = vmatprep.subr.bf16.mxu0 0
      %868 = vmatpush1.bf16.msra.mxu0 0
      %869 = vmatprep.subr.bf16.mxu0 0
      %870 = vmatpush1.bf16.msra.mxu0 0
      %871 = vmatprep.subr.bf16.mxu0 0
      %872 = vmatpush1.bf16.msra.mxu0 0
      %873 = vmatprep.subr.bf16.mxu0 0
      %874 = vmatpush1.bf16.msra.mxu0 0
      %875 = vmatprep.mubr.bf16.mxu0 0
      %876 = vmatmul.mubr.bf16.gmra.mrb[0].mxu0 %v774
      %v877 = vpop.f32.mrb[0].mxu0
      %v878 = vadd.f32 %v794, %v877
      %v879 = vpop.f32.mrb[0].mxu0
      %v880 = vpop.f32.mrb[0].mxu0
      %v881 = vadd.f32 %v794, %v880
      %v882 = vpop.f32.mrb[0].mxu0
      %883 = vmatprep.mubr.bf16.mxu0 0
      %884 = vmatmul.mubr.bf16.gmra.mrb[0].mxu0 %v775
      %v885 = vpop.f32.mrb[0].mxu0
      %v886 = vadd.f32 %v794, %v885
      %v887 = vpop.f32.mrb[0].mxu0
      %v888 = vpop.f32.mrb[0].mxu0
      %v889 = vadd.f32 %v794, %v888
      %v890 = vpop.f32.mrb[0].mxu0
      %891 = vmatprep.mubr.bf16.mxu0 0
      %892 = vmatmul.mubr.bf16.gmra.mrb[0].mxu0 %v776
      %v893 = vpop.f32.mrb[0].mxu0
      %v894 = vadd.f32 %v794, %v893
      %v895 = vpop.f32.mrb[0].mxu0
      %v896 = vpop.f32.mrb[0].mxu0
      %v897 = vadd.f32 %v794, %v896
      %v898 = vpop.f32.mrb[0].mxu0
      %899 = vmatprep.mubr.bf16.mxu0 0
      %900 = vmatmul.mubr.bf16.gmra.mrb[0].mxu0 %v777
      %v901 = vpop.f32.mrb[0].mxu0
      %v902 = vadd.f32 %v794, %v901
      %v903 = vpop.f32.mrb[0].mxu0
      %v904 = vpop.f32.mrb[0].mxu0
      %v905 = vadd.f32 %v794, %v904
      %v906 = vpop.f32.mrb[0].mxu0
      %907 = vmatprep.mubr.bf16.mxu0 0
      %908 = vmatmul.mubr.bf16.gmra.mrb[0].mxu0 %v778
      %v909 = vpop.f32.mrb[0].mxu0
      %v910 = vadd.f32 %v794, %v909
      %v911 = vpop.f32.mrb[0].mxu0
      %v912 = vpop.f32.mrb[0].mxu0
      %v913 = vadd.f32 %v794, %v912
      %v914 = vpop.f32.mrb[0].mxu0
      %915 = vmatprep.mubr.bf16.mxu0 0
      %916 = vmatmul.mubr.bf16.gmra.mrb[0].mxu0 %v779
      %v917 = vpop.f32.mrb[0].mxu0
      %v918 = vadd.f32 %v794, %v917
      %v919 = vpop.f32.mrb[0].mxu0
      %v920 = vpop.f32.mrb[0].mxu0
      %v921 = vadd.f32 %v794, %v920
      %v922 = vpop.f32.mrb[0].mxu0
      %923 = vmatprep.mubr.bf16.mxu0 0
      %924 = vmatmul.mubr.bf16.gmra.mrb[0].mxu0 %v780
      %v925 = vpop.f32.mrb[0].mxu0
      %v926 = vadd.f32 %v794, %v925
      %v927 = vpop.f32.mrb[0].mxu0
      %v928 = vpop.f32.mrb[0].mxu0
      %v929 = vadd.f32 %v794, %v928
      %v930 = vpop.f32.mrb[0].mxu0
      %931 = vmatprep.mubr.bf16.mxu0 0
      %932 = vmatmul.mubr.bf16.gmra.mrb[0].mxu0 %v781
      %v933 = vpop.f32.mrb[0].mxu0
      %v934 = vadd.f32 %v794, %v933
      %v935 = vpop.f32.mrb[0].mxu0
      %v936 = vpop.f32.mrb[0].mxu0
      %v937 = vadd.f32 %v794, %v936
      %v938 = vpop.f32.mrb[0].mxu0
      %939 = vmatprep.mubr.bf16.mxu0 0
      %940 = vmatmul.mubr.bf16.gmra.mrb[0].mxu0 %v782
      %v941 = vpop.f32.mrb[0].mxu0
      %v942 = vadd.f32 %v794, %v941
      %v943 = vpop.f32.mrb[0].mxu0
      %v944 = vpop.f32.mrb[0].mxu0
      %v945 = vadd.f32 %v794, %v944
      %v946 = vpop.f32.mrb[0].mxu0
      %947 = vmatprep.mubr.bf16.mxu0 0
      %948 = vmatmul.mubr.bf16.gmra.mrb[0].mxu0 %v783
      %v949 = vpop.f32.mrb[0].mxu0
      %v950 = vadd.f32 %v794, %v949
      %v951 = vpop.f32.mrb[0].mxu0
      %v952 = vpop.f32.mrb[0].mxu0
      %v953 = vadd.f32 %v794, %v952
      %v954 = vpop.f32.mrb[0].mxu0
      %955 = vmatprep.mubr.bf16.mxu0 0
      %956 = vmatmul.mubr.bf16.gmra.mrb[0].mxu0 %v784
      %v957 = vpop.f32.mrb[0].mxu0
      %v958 = vadd.f32 %v794, %v957
      %v959 = vpop.f32.mrb[0].mxu0
      %v960 = vpop.f32.mrb[0].mxu0
      %v961 = vadd.f32 %v794, %v960
      %v962 = vpop.f32.mrb[0].mxu0
      %963 = vmatprep.mubr.bf16.mxu0 0
      %964 = vmatmul.mubr.bf16.gmra.mrb[0].mxu0 %v785
      %v965 = vpop.f32.mrb[0].mxu0
      %v966 = vadd.f32 %v794, %v965
      %v967 = vpop.f32.mrb[0].mxu0
      %v968 = vpop.f32.mrb[0].mxu0
      %v969 = vadd.f32 %v794, %v968
      %v970 = vpop.f32.mrb[0].mxu0
      %971 = vmatprep.mubr.bf16.mxu0 0
      %972 = vmatmul.mubr.bf16.gmra.mrb[0].mxu0 %v786
      %v973 = vpop.f32.mrb[0].mxu0
      %v974 = vadd.f32 %v794, %v973
      %v975 = vpop.f32.mrb[0].mxu0
      %v976 = vpop.f32.mrb[0].mxu0
      %v977 = vadd.f32 %v794, %v976
      %v978 = vpop.f32.mrb[0].mxu0
      %979 = vmatprep.mubr.bf16.mxu0 0
      %980 = vmatmul.mubr.bf16.gmra.mrb[0].mxu0 %v787
      %v981 = vpop.f32.mrb[0].mxu0
      %v982 = vadd.f32 %v794, %v981
      %v983 = vpop.f32.mrb[0].mxu0
      %v984 = vpop.f32.mrb[0].mxu0
      %v985 = vadd.f32 %v794, %v984
      %v986 = vpop.f32.mrb[0].mxu0
      %987 = vmatprep.mubr.bf16.mxu0 0
      %988 = vmatmul.mubr.bf16.gmra.mrb[0].mxu0 %v788
      %v989 = vpop.f32.mrb[0].mxu0
      %v990 = vadd.f32 %v794, %v989
      %v991 = vpop.f32.mrb[0].mxu0
      %v992 = vpop.f32.mrb[0].mxu0
      %v993 = vadd.f32 %v794, %v992
      %v994 = vpop.f32.mrb[0].mxu0
      %995 = vmatprep.mubr.bf16.mxu0 0
      %996 = vmatmul.mubr.bf16.gmra.mrb[0].mxu0 %v789
      %v997 = vpop.f32.mrb[0].mxu0
      %v998 = vadd.f32 %v794, %v997
      %v999 = vpop.f32.mrb[0].mxu0
      %v1000 = vpop.f32.mrb[0].mxu0
      %v1001 = vadd.f32 %v794, %v1000
      %v1002 = vpop.f32.mrb[0].mxu0
      %1003 = vdwg.mxu0
      %1004 = vst [vmem:[%s172] sm:$0xff] %v878
      %1005 = vst [vmem:[%s172 + $0x8] sm:$0xff] %v881
      %1006 = vst [vmem:[%s172 + $0x10] sm:$0xff] %v886
      %1007 = vst [vmem:[%s172 + $0x18] sm:$0xff] %v889
      %1008 = vst [vmem:[%s172 + $0x20] sm:$0xff] %v894
      %1009 = vst [vmem:[%s172 + $0x28] sm:$0xff] %v897
      %1010 = vst [vmem:[%s172 + $0x30] sm:$0xff] %v902
      %1011 = vst [vmem:[%s172 + $0x38] sm:$0xff] %v905
      %1012 = vst [vmem:[%s172 + $0x40] sm:$0xff] %v910
      %1013 = vst [vmem:[%s172 + $0x48] sm:$0xff] %v913
      %1014 = vst [vmem:[%s172 + $0x50] sm:$0xff] %v918
      %1015 = vst [vmem:[%s172 + $0x58] sm:$0xff] %v921
      %1016 = vst [vmem:[%s172 + $0x60] sm:$0xff] %v926
      %1017 = vst [vmem:[%s172 + $0x68] sm:$0xff] %v929
      %1018 = vst [vmem:[%s172 + $0x70] sm:$0xff] %v934
      %1019 = vst [vmem:[%s172 + $0x78] sm:$0xff] %v937
      %1020 = vst [vmem:[%s172 + $0x80] sm:$0xff] %v942
      %1021 = vst [vmem:[%s172 + $0x88] sm:$0xff] %v945
      %1022 = vst [vmem:[%s172 + $0x90] sm:$0xff] %v950
      %1023 = vst [vmem:[%s172 + $0x98] sm:$0xff] %v953
      %1024 = vst [vmem:[%s172 + $0xa0] sm:$0xff] %v958
      %1025 = vst [vmem:[%s172 + $0xa8] sm:$0xff] %v961
      %1026 = vst [vmem:[%s172 + $0xb0] sm:$0xff] %v966
      %1027 = vst [vmem:[%s172 + $0xb8] sm:$0xff] %v969
      %1028 = vst [vmem:[%s172 + $0xc0] sm:$0xff] %v974
      %1029 = vst [vmem:[%s172 + $0xc8] sm:$0xff] %v977
      %1030 = vst [vmem:[%s172 + $0xd0] sm:$0xff] %v982
      %1031 = vst [vmem:[%s172 + $0xd8] sm:$0xff] %v985
      %1032 = vst [vmem:[%s172 + $0xe0] sm:$0xff] %v990
      %1033 = vst [vmem:[%s172 + $0xe8] sm:$0xff] %v993
      %1034 = vst [vmem:[%s172 + $0xf0] sm:$0xff] %v998
      %1035 = vst [vmem:[%s172 + $0xf8] sm:$0xff] %v1001
      %s1036 = smul.u32 32, %s14
      %p1037 = scmp.lt.s32.totalorder %s1036, 63
      %s1038 = scalar_select %p1037, %s1036, 63
      %s1039 = smul.addr %s1038, 8
      %s1040 = scalar_lea.vmem %s3, %s1039
      // Predicated region
      $region33: #{neural_network_wps_forward.1} parent=31 // pred_check
        %p1041 = pneg %p100
      $region34: #{neural_network_wps_forward.1} parent=31 // pred_check_branch
        %1043 = sbr.rel (%p1041) target = $region36
      $region35: #{neural_network_wps_forward.1} parent=31 // pred_region
        %s1044 = smul.u32 32, %s14
      $region36: #{neural_network_wps_forward.1} parent=31 // pred_fallthru
        _
    $region32: #{neural_network_wps_forward.1} parent=5 // pred_fallthru
      _
    %p1045 = scmp.le.s32.totalorder 2, %s9
    // Predicated region
    $region37: #{neural_network_wps_forward.1} parent=5 // pred_check
      %p1046 = pneg %p1045
    $region38: #{neural_network_wps_forward.1} parent=5 // pred_check_branch
      %1048 = sbr.rel (%p1046) target = $region40
    $region39: #{neural_network_wps_forward.1} parent=5 // pred_region
      %s1049 = ssub.s32 %s9, 2
      // Predicated region
      $region41: #{neural_network_wps_forward.1} parent=39 // pred_check
        %p1050 = pneg %p106
      $region42: #{neural_network_wps_forward.1} parent=39 // pred_check_branch
        %1052 = sbr.rel (%p1050) target = $region44
      $region43: #{neural_network_wps_forward.1} parent=39 // pred_region
        %s1053 = smul.u32 32, %s15
        %p1054 = scmp.lt.s32.totalorder %s1053, 63
        %s1055 = scalar_select %p1054, %s1053, 63
        %s1056 = smul.addr %s1055, 8
        %s1057 = scalar_lea.vmem %s3, %s1056
      $region44: #{neural_network_wps_forward.1} parent=39 // pred_fallthru
        _
    $region40: #{neural_network_wps_forward.1} parent=5 // pred_fallthru
      _
  $region6: #{neural_network_wps_forward.1} parent=0 // loop_footer
    %s13 = sadd.s32 1, %s9
  $region7: #{neural_network_wps_forward.1} parent=0 // loop_footer_branch
    %8 = sbr.rel target = $region3
  $region8: #{neural_network_wps_forward.1} parent=0 // loop_exit
    _

</llo_original>
